<compile_context>
chip_gen: v6e
topology: v6e:2x2x1
jax: 0.10.0
libtpu: 0.0.40
codegen_flags: <defaults>
</compile_context>

<pallas_src>
import jax
import jax.numpy as jnp
from jax.experimental import pallas as pl
from jax.experimental.pallas import tpu as pltpu


def _round_up(v, m):
    return ((v + m - 1) // m) * m


def _make_tcn_kernel(K, dil, padding, Cin_p, Cout_p, TILE_L, W1t, Wx, R2, rextra,
                     has_ds, compute_dtype):
    """All sizes here are the padded (sublane/lane aligned) sizes."""

    def kernel(xp_ref, w1_ref, t1_ref, w2_ref, t2_ref, mask_ref, o_ref, slab):
        lt = pl.program_id(1)
        x0 = pl.multiple_of(lt * TILE_L, 128)            # lane-aligned window start
        xtile = xp_ref[:, :, pl.ds(x0, Wx)][0]           # (Cin_p, Wx)

        # ---- conv1 im2col slab: one lane-dense store per tap ----
        for k in range(K):
            s = k * dil
            slab[k * Cin_p:(k + 1) * Cin_p, :] = xtile[:, s:s + W1t]
        h = jnp.dot(w1_ref[...], slab[:K * Cin_p, :],
                    preferred_element_type=jnp.float32)
        h = jnp.maximum(h + t1_ref[...], 0.0)            # bn1 shift (scale folded) + ReLU
        hc = h.astype(compute_dtype)
        # dropout1: identity (eval mode)

        # ---- conv2 (+ fused residual & downsample bias) im2col slab ----
        # slab rows are reused (conv1 slab is dead after the dot above).
        for k in range(K):
            s = k * dil
            slab[k * Cout_p:(k + 1) * Cout_p, :TILE_L] = (
                hc[:, s:s + TILE_L] * mask_ref[k:k + 1, :])
        r0 = K * Cout_p
        slab[r0:r0 + Cin_p, :TILE_L] = xtile[:, 2 * padding:2 * padding + TILE_L]
        if has_ds:
            # bias-validity row (1 where t < L) replicated over the alignment filler
            # rows; only the first matching weight column is bd, the rest are zero.
            slab[r0 + Cin_p:R2, :TILE_L] = jnp.broadcast_to(
                mask_ref[K:K + 1, :], (rextra, TILE_L))
        out = jnp.dot(w2_ref[...], slab[:R2, :TILE_L],
                      preferred_element_type=jnp.float32)
        # dropout2: identity (eval mode)
        o_ref[0] = jnp.maximum(out + t2_ref[...], 0.0).astype(o_ref.dtype)

    return kernel


def tcn_block_forward(x, params, *, kernel_size, stride, dilation, padding,
                      eps=1e-5, compute_dtype=jnp.bfloat16):
    if stride != 1:
        # TODO(synk): stride > 1 needs output decimation / index_map restructuring.
        raise NotImplementedError("stride != 1 is not supported by the Pallas kernel")

    N, Cin, L = x.shape
    Cout = params["w1"].shape[0]
    K, dil = kernel_size, dilation
    has_ds = "wd" in params
    f32 = jnp.float32

    Lp = L + 2 * padding
    L1 = (Lp - dil * (K - 1) - 1) // stride + 1          # length after conv1
    L1p = L1 + 2 * padding
    L2 = (L1p - dil * (K - 1) - 1) // stride + 1         # length after conv2

    c_align = 16 if compute_dtype == jnp.bfloat16 else 8
    Cin_p = _round_up(Cin, c_align)
    Cout_p = _round_up(Cout, c_align)

    # ---- time tiling: TILE_L output lanes per grid step ----
    TILE_L = min(_round_up(L2, 128), 512)
    n_lt = pl.cdiv(L2, TILE_L)
    Wout_t = n_lt * TILE_L
    halo = dil * (K - 1)
    W1t = _round_up(TILE_L + halo, 128)                  # conv1-output lanes per tile
    Wx = _round_up(max(W1t + halo, TILE_L + 2 * padding), 128)  # input lanes per tile
    W_in = max((n_lt - 1) * TILE_L + Wx, _round_up(L + 2 * padding, 128))

    # ---- fold BN: scale into the conv weights, (bias - mean)*scale + beta into t ----
    def bn_fold(g, be, m, v, b):
        s = (g / jnp.sqrt(v + eps)).astype(f32)
        t = ((b - m) * s + be).astype(f32)
        return s, t

    s1, t1 = bn_fold(params["g1"], params["be1"], params["m1"], params["v1"], params["b1"])
    s2, t2 = bn_fold(params["g2"], params["be2"], params["m2"], params["v2"], params["b2"])
    t1 = jnp.pad(t1, (0, Cout_p - Cout)).reshape(Cout_p, 1)
    t2 = jnp.pad(t2, (0, Cout_p - Cout)).reshape(Cout_p, 1)

    def conv_w(w, scale, cin, cin_p):
        # (Cout, cin, K) * scale[o] -> pad channels -> tap-major (Cout_p, K*cin_p)
        w = w * scale[:, None, None]
        w = jnp.pad(w, ((0, Cout_p - Cout), (0, cin_p - cin), (0, 0)))
        return jnp.transpose(w, (0, 2, 1)).reshape(Cout_p, K * cin_p)

    w1s = conv_w(params["w1"], s1, Cin, Cin_p).astype(compute_dtype)
    w2_taps = conv_w(params["w2"], s2, Cout, Cout_p)

    # residual fused into the conv2 matmul: extra weight columns (wd or identity),
    # plus (downsample only) a bias column applied through a 0/1 validity row.
    if has_ds:
        res_w = jnp.pad(params["wd"][:, :, 0],
                        ((0, Cout_p - Cout), (0, Cin_p - Cin)))
        rextra = c_align
        bias_cols = jnp.zeros((Cout_p, rextra), f32).at[:, 0].set(
            jnp.pad(params["bd"], (0, Cout_p - Cout)))
        w2aug = jnp.concatenate([w2_taps, res_w, bias_cols], axis=1)
    else:
        res_w = jnp.eye(Cout_p, Cin_p, dtype=f32)        # identity residual (Cin == Cout)
        rextra = 0
        w2aug = jnp.concatenate([w2_taps, res_w], axis=1)
    w2aug = w2aug.astype(compute_dtype)
    R2 = K * Cout_p + Cin_p + rextra

    # ---- precomputed 0/1 masks (replace in-kernel iota/compare/select) ----
    MROWS = _round_up(K + 1, 8)
    t_idx = jnp.arange(Wout_t)
    rows = []
    for k in range(K):
        u = t_idx + k * dil - padding                    # conv2 tap k reads h[u]
        rows.append(((u >= 0) & (u < L1)).astype(compute_dtype))
    rows.append((t_idx < L).astype(compute_dtype))       # residual / bias validity
    masks = jnp.pad(jnp.stack(rows, axis=0), ((0, MROWS - (K + 1)), (0, 0)))

    # input: channels padded to Cin_p, time padded with 2*padding zeros on the left
    # (conv1 + conv2 left padding) and zeros to W_in on the right.
    xp = jnp.pad(x, ((0, 0), (0, Cin_p - Cin),
                     (2 * padding, W_in - L - 2 * padding))).astype(compute_dtype)

    Rmax = max(K * Cin_p, R2)                            # shared slab scratch
    Wmax = W1t

    kernel = _make_tcn_kernel(K, dil, padding, Cin_p, Cout_p, TILE_L, W1t, Wx,
                              R2, rextra, has_ds, compute_dtype)

    isz = jnp.dtype(compute_dtype).itemsize
    osz = jnp.dtype(x.dtype).itemsize
    vmem_bytes = (2 * Cin_p * W_in * isz                 # xp block (double-buffered)
                  + 2 * Cout_p * TILE_L * osz            # output block
                  + 2 * (w1s.size + w2aug.size + masks.size) * isz
                  + 2 * (t1.size + t2.size) * 4
                  + Rmax * Wmax * isz                    # shared im2col scratch
                  + 3 * Cout_p * W1t * 4)                # f32 intermediates headroom
    vmem_limit = int(min(max(2 * vmem_bytes, 8 * 1024 * 1024), 100 * 1024 * 1024))

    out_padded = pl.pallas_call(
        kernel,
        out_shape=jax.ShapeDtypeStruct((N, Cout_p, Wout_t), x.dtype),
        grid=(N, n_lt),
        in_specs=[
            pl.BlockSpec((1, Cin_p, W_in), lambda n, lt: (n, 0, 0)),
            pl.BlockSpec(w1s.shape, lambda n, lt: (0, 0)),
            pl.BlockSpec(t1.shape, lambda n, lt: (0, 0)),
            pl.BlockSpec(w2aug.shape, lambda n, lt: (0, 0)),
            pl.BlockSpec(t2.shape, lambda n, lt: (0, 0)),
            pl.BlockSpec((MROWS, TILE_L), lambda n, lt: (0, lt)),
        ],
        out_specs=pl.BlockSpec((1, Cout_p, TILE_L), lambda n, lt: (n, 0, lt)),
        scratch_shapes=[pltpu.VMEM((Rmax, Wmax), compute_dtype)],
        compiler_params=pltpu.CompilerParams(
            dimension_semantics=("parallel", "arbitrary"),
            vmem_limit_bytes=vmem_limit),
    )(xp, w1s, t1, w2aug, t2, masks)

    return out_padded[:, :Cout, :L2]


def ref_forward(x, p, *, kernel_size, stride, dilation, padding, eps=1e-5):
    """Pure-JAX reference of the PyTorch forward (eval mode)."""
    def conv(y, w, b, s, d, pad):
        out = jax.lax.conv_general_dilated(
            y, w, window_strides=(s,), padding=[(pad, pad)],
            rhs_dilation=(d,), dimension_numbers=("NCH", "OIH", "NCH"))
        return out + b[None, :, None]

    def bn(y, g, be, m, v):
        return (y - m[None, :, None]) * (g / jnp.sqrt(v + eps))[None, :, None] \
            + be[None, :, None]

    out = conv(x, p["w1"], p["b1"], stride, dilation, padding)
    out = jax.nn.relu(bn(out, p["g1"], p["be1"], p["m1"], p["v1"]))
    out = conv(out, p["w2"], p["b2"], stride, dilation, padding)
    out = bn(out, p["g2"], p["be2"], p["m2"], p["v2"])
    residual = x
    if "wd" in p:
        residual = conv(x, p["wd"], p["bd"], 1, 1, 0)
    Lr, Lo = residual.shape[2], out.shape[2]
    if Lr < Lo:
        residual = jnp.pad(residual, ((0, 0), (0, 0), (0, Lo - Lr)))
    elif Lr > Lo:
        residual = residual[:, :, :Lo]
    return jax.nn.relu(out + residual)


if __name__ == "__main__":
    import numpy as np

    K, stride, dilation, padding = 3, 1, 2, 2

    def make_params(key, Cin, Cout):
        ks = jax.random.split(key, 16)

        def kaiming(k, shape, fan_out):
            # kaiming_normal_(mode='fan_out', nonlinearity='relu') -> std = sqrt(2/fan_out)
            return jax.random.normal(k, shape, jnp.float32) * jnp.sqrt(2.0 / fan_out)

        def small(k, shape):
            return 0.1 * jax.random.normal(k, shape, jnp.float32)

        p = {
            "w1": kaiming(ks[0], (Cout, Cin, K), Cout * K),
            "b1": small(ks[1], (Cout,)),
            "g1": 1.0 + small(ks[2], (Cout,)),
            "be1": small(ks[3], (Cout,)),
            "m1": small(ks[4], (Cout,)),
            "v1": jax.random.uniform(ks[5], (Cout,), jnp.float32, 0.5, 1.5),
            "w2": kaiming(ks[6], (Cout, Cout, K), Cout * K),
            "b2": small(ks[7], (Cout,)),
            "g2": 1.0 + small(ks[8], (Cout,)),
            "be2": small(ks[9], (Cout,)),
            "m2": small(ks[10], (Cout,)),
            "v2": jax.random.uniform(ks[11], (Cout,), jnp.float32, 0.5, 1.5),
        }
        if Cin != Cout:
            p["wd"] = kaiming(ks[12], (Cout, Cin, 1), Cout * 1)
            p["bd"] = small(ks[13], (Cout,))
        return p

    key = jax.random.PRNGKey(0)
    k1, k2, k3, k4 = jax.random.split(key, 4)

    for (Cin, Cout, kp, kx) in [(4, 8, k1, k2),    # downsample-residual path
                                (8, 8, k3, k4)]:   # identity-residual path
        N, L = 2, 16
        params = make_params(kp, Cin, Cout)
        x = jax.random.normal(kx, (N, Cin, L), jnp.float32)

        ref = ref_forward(x, params, kernel_size=K, stride=stride,
                          dilation=dilation, padding=padding)

        # f32 matmul path: tight check against the XLA reference
        out_f32 = tcn_block_forward(x, params, kernel_size=K, stride=stride,
                                    dilation=dilation, padding=padding,
                                    compute_dtype=jnp.float32)
        out_f32 = jax.block_until_ready(out_f32)
        assert out_f32.shape == ref.shape, (out_f32.shape, ref.shape)
        np.testing.assert_allclose(np.asarray(out_f32), np.asarray(ref),
                                   rtol=2e-3, atol=2e-3)

        # bf16 matmul path (native MXU fast path), f32 accumulation: looser tolerance
        out_bf16 = tcn_block_forward(x, params, kernel_size=K, stride=stride,
                                     dilation=dilation, padding=padding,
                                     compute_dtype=jnp.bfloat16)
        out_bf16 = jax.block_until_ready(out_bf16)
        assert out_bf16.shape == ref.shape, (out_bf16.shape, ref.shape)
        np.testing.assert_allclose(np.asarray(out_bf16), np.asarray(ref),
                                   rtol=5e-2, atol=5e-2)

    print("KERNEL_OK")
</pallas_src>

<mosaic_0001>
module attributes {stable_mosaic.version = 11 : i64} {
  func.func @kernel(%arg0: i32, %arg1: i32, %arg2: memref<1x8x384xf32, #tpu.memory_space<vmem>>, %arg3: memref<8x24xf32, #tpu.memory_space<vmem>>, %arg4: memref<8x1xf32, #tpu.memory_space<vmem>>, %arg5: memref<8x40xf32, #tpu.memory_space<vmem>>, %arg6: memref<8x1xf32, #tpu.memory_space<vmem>>, %arg7: memref<8x128xf32, #tpu.memory_space<vmem>>, %arg8: memref<1x8x128xf32, #tpu.memory_space<vmem>>, %arg9: memref<40x256xf32, #tpu.memory_space<vmem>>) attributes {dimension_semantics = [#tpu.dimension_semantics<parallel>, #tpu.dimension_semantics<arbitrary>], iteration_bounds = array<i64: 2, 1>, scalar_prefetch = 0 : i64, scratch_operands = 1 : i64, tpu.core_type = #tpu.core_type<tc>, window_params = [{transform_indices = @transform_0, window_bounds = array<i64: 1, 8, 384>}, {pipeline_mode = #tpu.pipeline_mode<synchronous>, transform_indices = @transform_1, window_bounds = array<i64: 8, 24>}, {pipeline_mode = #tpu.pipeline_mode<synchronous>, transform_indices = @transform_2, window_bounds = array<i64: 8, 1>}, {pipeline_mode = #tpu.pipeline_mode<synchronous>, transform_indices = @transform_3, window_bounds = array<i64: 8, 40>}, {pipeline_mode = #tpu.pipeline_mode<synchronous>, transform_indices = @transform_4, window_bounds = array<i64: 8, 1>}, {transform_indices = @transform_5, window_bounds = array<i64: 8, 128>}, {transform_indices = @transform_6, window_bounds = array<i64: 1, 8, 128>}]} {
    %c128_i32 = arith.constant 128 : i32
    %0 = arith.muli %arg1, %c128_i32 : i32
    %1 = tpu.assume_multiple %0, 128 : i32
    %c0 = arith.constant 0 : index
    %c0_0 = arith.constant 0 : index
    %2 = arith.index_cast %1 : i32 to index
    %3 = vector.load %arg2[%c0, %c0_0, %2] : memref<1x8x384xf32, #tpu.memory_space<vmem>>, vector<1x8x384xf32>
    %4 = vector.shape_cast %3 : vector<1x8x384xf32> to vector<8x384xf32>
    %5 = vector.extract_strided_slice %4 {offsets = [0, 0], sizes = [8, 256], strides = [1, 1]} : vector<8x384xf32> to vector<8x256xf32>
    %c0_1 = arith.constant 0 : index
    %c0_2 = arith.constant 0 : index
    %6 = vector.load %arg9[%c0_1, %c0_2] : memref<40x256xf32, #tpu.memory_space<vmem>>, vector<8x256xf32>
    tpu.vector_store %arg9[%c0_1, %c0_2], %5 {strides = array<i32>} : memref<40x256xf32, #tpu.memory_space<vmem>>, vector<8x256xf32>,
    %7 = vector.extract_strided_slice %4 {offsets = [0, 2], sizes = [8, 256], strides = [1, 1]} : vector<8x384xf32> to vector<8x256xf32>
    %c8 = arith.constant 8 : index
    %c0_3 = arith.constant 0 : index
    %8 = vector.load %arg9[%c8, %c0_3] : memref<40x256xf32, #tpu.memory_space<vmem>>, vector<8x256xf32>
    tpu.vector_store %arg9[%c8, %c0_3], %7 {strides = array<i32>} : memref<40x256xf32, #tpu.memory_space<vmem>>, vector<8x256xf32>,
    %9 = vector.extract_strided_slice %4 {offsets = [0, 4], sizes = [8, 256], strides = [1, 1]} : vector<8x384xf32> to vector<8x256xf32>
    %c16 = arith.constant 16 : index
    %c0_4 = arith.constant 0 : index
    %10 = vector.load %arg9[%c16, %c0_4] : memref<40x256xf32, #tpu.memory_space<vmem>>, vector<8x256xf32>
    tpu.vector_store %arg9[%c16, %c0_4], %9 {strides = array<i32>} : memref<40x256xf32, #tpu.memory_space<vmem>>, vector<8x256xf32>,
    %c0_5 = arith.constant 0 : index
    %c0_6 = arith.constant 0 : index
    %11 = vector.load %arg3[%c0_5, %c0_6] : memref<8x24xf32, #tpu.memory_space<vmem>>, vector<8x24xf32>
    %c0_7 = arith.constant 0 : index
    %c0_8 = arith.constant 0 : index
    %12 = vector.load %arg9[%c0_7, %c0_8] : memref<40x256xf32, #tpu.memory_space<vmem>>, vector<24x256xf32>
    %cst = arith.constant dense<0.000000e+00> : vector<8x256xf32>
    %13 = tpu.matmul %11, %12, %cst {dimension_numbers = #tpu.dot_dimension_numbers<[1], [0], [0], [1], [0, 0, 1, 1], [], []>} : vector<8x24xf32>, vector<24x256xf32>, vector<8x256xf32> -> vector<8x256xf32>
    %c0_9 = arith.constant 0 : index
    %c0_10 = arith.constant 0 : index
    %14 = vector.load %arg4[%c0_9, %c0_10] : memref<8x1xf32, #tpu.memory_space<vmem>>, vector<8x1xf32>
    %15 = vector.broadcast %14 : vector<8x1xf32> to vector<8x256xf32>
    %16 = arith.addf %13, %15 : vector<8x256xf32>
    %cst_11 = arith.constant 0.000000e+00 : f32
    %17 = vector.broadcast %cst_11 : f32 to vector<8x256xf32>
    %18 = arith.maximumf %16, %17 : vector<8x256xf32>
    %19 = vector.extract_strided_slice %18 {offsets = [0, 0], sizes = [8, 128], strides = [1, 1]} : vector<8x256xf32> to vector<8x128xf32>
    %c0_12 = arith.constant 0 : index
    %c0_13 = arith.constant 0 : index
    %20 = vector.load %arg7[%c0_12, %c0_13] : memref<8x128xf32, #tpu.memory_space<vmem>>, vector<1x128xf32>
    %21 = vector.broadcast %20 : vector<1x128xf32> to vector<8x128xf32>
    %22 = arith.mulf %19, %21 : vector<8x128xf32>
    %c0_14 = arith.constant 0 : index
    %c0_15 = arith.constant 0 : index
    %23 = vector.load %arg9[%c0_14, %c0_15] : memref<40x256xf32, #tpu.memory_space<vmem>>, vector<8x128xf32>
    tpu.vector_store %arg9[%c0_14, %c0_15], %22 {strides = array<i32>} : memref<40x256xf32, #tpu.memory_space<vmem>>, vector<8x128xf32>,
    %24 = vector.extract_strided_slice %18 {offsets = [0, 2], sizes = [8, 128], strides = [1, 1]} : vector<8x256xf32> to vector<8x128xf32>
    %c1 = arith.constant 1 : index
    %c0_16 = arith.constant 0 : index
    %25 = vector.load %arg7[%c1, %c0_16] : memref<8x128xf32, #tpu.memory_space<vmem>>, vector<1x128xf32>
    %26 = vector.broadcast %25 : vector<1x128xf32> to vector<8x128xf32>
    %27 = arith.mulf %24, %26 : vector<8x128xf32>
    %c8_17 = arith.constant 8 : index
    %c0_18 = arith.constant 0 : index
    %28 = vector.load %arg9[%c8_17, %c0_18] : memref<40x256xf32, #tpu.memory_space<vmem>>, vector<8x128xf32>
    tpu.vector_store %arg9[%c8_17, %c0_18], %27 {strides = array<i32>} : memref<40x256xf32, #tpu.memory_space<vmem>>, vector<8x128xf32>,
    %29 = vector.extract_strided_slice %18 {offsets = [0, 4], sizes = [8, 128], strides = [1, 1]} : vector<8x256xf32> to vector<8x128xf32>
    %c2 = arith.constant 2 : index
    %c0_19 = arith.constant 0 : index
    %30 = vector.load %arg7[%c2, %c0_19] : memref<8x128xf32, #tpu.memory_space<vmem>>, vector<1x128xf32>
    %31 = vector.broadcast %30 : vector<1x128xf32> to vector<8x128xf32>
    %32 = arith.mulf %29, %31 : vector<8x128xf32>
    %c16_20 = arith.constant 16 : index
    %c0_21 = arith.constant 0 : index
    %33 = vector.load %arg9[%c16_20, %c0_21] : memref<40x256xf32, #tpu.memory_space<vmem>>, vector<8x128xf32>
    tpu.vector_store %arg9[%c16_20, %c0_21], %32 {strides = array<i32>} : memref<40x256xf32, #tpu.memory_space<vmem>>, vector<8x128xf32>,
    %34 = vector.extract_strided_slice %4 {offsets = [0, 4], sizes = [8, 128], strides = [1, 1]} : vector<8x384xf32> to vector<8x128xf32>
    %c24 = arith.constant 24 : index
    %c0_22 = arith.constant 0 : index
    %35 = vector.load %arg9[%c24, %c0_22] : memref<40x256xf32, #tpu.memory_space<vmem>>, vector<8x128xf32>
    tpu.vector_store %arg9[%c24, %c0_22], %34 {strides = array<i32>} : memref<40x256xf32, #tpu.memory_space<vmem>>, vector<8x128xf32>,
    %c3 = arith.constant 3 : index
    %c0_23 = arith.constant 0 : index
    %36 = vector.load %arg7[%c3, %c0_23] : memref<8x128xf32, #tpu.memory_space<vmem>>, vector<1x128xf32>
    %37 = vector.shape_cast %36 : vector<1x128xf32> to vector<1x128xf32>
    %38 = vector.broadcast %37 : vector<1x128xf32> to vector<8x128xf32>
    %c32 = arith.constant 32 : index
    %c0_24 = arith.constant 0 : index
    %39 = vector.load %arg9[%c32, %c0_24] : memref<40x256xf32, #tpu.memory_space<vmem>>, vector<8x128xf32>
    tpu.vector_store %arg9[%c32, %c0_24], %38 {strides = array<i32>} : memref<40x256xf32, #tpu.memory_space<vmem>>, vector<8x128xf32>,
    %c0_25 = arith.constant 0 : index
    %c0_26 = arith.constant 0 : index
    %40 = vector.load %arg5[%c0_25, %c0_26] : memref<8x40xf32, #tpu.memory_space<vmem>>, vector<8x40xf32>
    %c0_27 = arith.constant 0 : index
    %c0_28 = arith.constant 0 : index
    %41 = vector.load %arg9[%c0_27, %c0_28] : memref<40x256xf32, #tpu.memory_space<vmem>>, vector<40x128xf32>
    %cst_29 = arith.constant dense<0.000000e+00> : vector<8x128xf32>
    %42 = tpu.matmul %40, %41, %cst_29 {dimension_numbers = #tpu.dot_dimension_numbers<[1], [0], [0], [1], [0, 0, 1, 1], [], []>} : vector<8x40xf32>, vector<40x128xf32>, vector<8x128xf32> -> vector<8x128xf32>
    %c0_30 = arith.constant 0 : index
    %c0_31 = arith.constant 0 : index
    %43 = vector.load %arg6[%c0_30, %c0_31] : memref<8x1xf32, #tpu.memory_space<vmem>>, vector<8x1xf32>
    %44 = vector.broadcast %43 : vector<8x1xf32> to vector<8x128xf32>
    %45 = arith.addf %42, %44 : vector<8x128xf32>
    %cst_32 = arith.constant 0.000000e+00 : f32
    %46 = vector.broadcast %cst_32 : f32 to vector<8x128xf32>
    %47 = arith.maximumf %45, %46 : vector<8x128xf32>
    %c0_33 = arith.constant 0 : index
    %c0_34 = arith.constant 0 : index
    %c0_35 = arith.constant 0 : index
    %48 = vector.load %arg8[%c0_33, %c0_34, %c0_35] : memref<1x8x128xf32, #tpu.memory_space<vmem>>, vector<1x8x128xf32>
    %49 = vector.shape_cast %48 : vector<1x8x128xf32> to vector<8x128xf32>
    %50 = vector.shape_cast %47 : vector<8x128xf32> to vector<1x8x128xf32>
    tpu.vector_store %arg8[%c0_33, %c0_34, %c0_35], %50 {strides = array<i32>} : memref<1x8x128xf32, #tpu.memory_space<vmem>>, vector<1x8x128xf32>,
    return
  }
  func.func @transform_0(%arg0: i32, %arg1: i32) -> (i32, i32, i32) {
    %c0_i32 = arith.constant 0 : i32
    %c0_i32_0 = arith.constant 0 : i32
    %c0_i32_1 = arith.constant 0 : i32
    return %arg0, %c0_i32, %c0_i32_0 : i32, i32, i32
  }
  func.func @transform_1(%arg0: i32, %arg1: i32) -> (i32, i32) {
    %c0_i32 = arith.constant 0 : i32
    %c0_i32_0 = arith.constant 0 : i32
    %c0_i32_1 = arith.constant 0 : i32
    return %c0_i32, %c0_i32_0 : i32, i32
  }
  func.func @transform_2(%arg0: i32, %arg1: i32) -> (i32, i32) {
    %c0_i32 = arith.constant 0 : i32
    %c0_i32_0 = arith.constant 0 : i32
    %c0_i32_1 = arith.constant 0 : i32
    return %c0_i32, %c0_i32_0 : i32, i32
  }
  func.func @transform_3(%arg0: i32, %arg1: i32) -> (i32, i32) {
    %c0_i32 = arith.constant 0 : i32
    %c0_i32_0 = arith.constant 0 : i32
    %c0_i32_1 = arith.constant 0 : i32
    return %c0_i32, %c0_i32_0 : i32, i32
  }
  func.func @transform_4(%arg0: i32, %arg1: i32) -> (i32, i32) {
    %c0_i32 = arith.constant 0 : i32
    %c0_i32_0 = arith.constant 0 : i32
    %c0_i32_1 = arith.constant 0 : i32
    return %c0_i32, %c0_i32_0 : i32, i32
  }
  func.func @transform_5(%arg0: i32, %arg1: i32) -> (i32, i32) {
    %c0_i32 = arith.constant 0 : i32
    %c0_i32_0 = arith.constant 0 : i32
    return %c0_i32, %arg1 : i32, i32
  }
  func.func @transform_6(%arg0: i32, %arg1: i32) -> (i32, i32, i32) {
    %c0_i32 = arith.constant 0 : i32
    %c0_i32_0 = arith.constant 0 : i32
    return %arg0, %c0_i32, %arg1 : i32, i32, i32
  }
}

</mosaic_0001>

<llo_original>
// kernel: tpu_custom_call.1
$region0: #{tpu_custom_call.1}
  #allocation0 [shape = 'u32[]', space=smem, size = 0x4, offset = 0x4, fixed_abs, tag = 'smem constant byte address 0x4 - core index']
  #allocation1 [shape = 'u32[144,128]{1,0:T(1,128)}', space=vmem, size = 0x12000, scoped, tag = 'internal scratch']
  #allocation2 [shape = 'f32[40,256]{1,0:T(8,128)}', space=vmem, size = 0xa000, scoped, tag = 'scratch operand']
  %s0 = inlined_call_operand.hbm [shape: f32[2,8,384], index: 0, kind: input, shape index: {}]
  %s1 = inlined_call_operand.vmem [shape: f32[8,24], index: 1, kind: input, shape index: {}]
  %s2 = inlined_call_operand.vmem [shape: f32[8,1], index: 2, kind: input, shape index: {}]
  %s3 = inlined_call_operand.vmem [shape: f32[8,40], index: 3, kind: input, shape index: {}]
  %s4 = inlined_call_operand.vmem [shape: f32[8,1], index: 4, kind: input, shape index: {}]
  %s5 = inlined_call_operand.vmem [shape: f32[8,128], index: 5, kind: input, shape index: {}]
  %s6 = inlined_call_operand.hbm [shape: f32[2,8,128], index: 6, kind: output, shape index: {}]
  %s7 = sld [smem:[#allocation0]]
  $region61: #{tpu_custom_call.1} parent=0
    _
  %s9 = ssub.s32 1, %s7
  %s10 = scalar_select 0, %s9, %s7
  $region1: #{tpu_custom_call.1} parent=0
    #allocation3 [shape = 'u8[24576]{0}', space=vmem, size = 0x6000, scoped, tag = 'input window, operand 0']
    #allocation4 [shape = 's32[2]{0}', space=sflag, size = 0x8, scoped, tag = 'scoped memory for tpu_custom_call.1']
    #allocation5 [shape = 's32[2]{0}', space=sflag, size = 0x8, scoped, tag = 'scoped memory for tpu_custom_call.1']
    #allocation6 [shape = 'u8[8192]{0}', space=vmem, size = 0x2000, scoped, tag = 'output window, operand 0']
    %11 = vsyncpa [#allocation4], 0
    %s12 = scalar_lea.sflag [#allocation4], 1
    %13 = vsyncpa %s12, 0
    %14 = vsyncpa [#allocation5], 0
    %s15 = scalar_lea.sflag [#allocation5], 1
    %16 = vsyncpa %s15, 0
    loop: start=0, step=1, limit=4
    $region2: #{tpu_custom_call.1} parent=1 // loop_pre_header
      _
    $region3: #{tpu_custom_call.1} parent=1 // loop_header
      %s18 = sphi 0, %s22
      %p19 = scmp.ge.s32.totalorder %s18, 4
      %s25 = sphi 0, %s37
      %s26 = sphi 0, %s33
      %s27 = sphi 0, %s25
      %s28 = sphi 0, %s26
      %s29 = sphi 0, %s27
      %s30 = sphi 0, %s28
      %s40 = sphi 0, %s42
      %s43 = sphi 0, %s40
      %s44 = sphi 0, %s43
      %s60 = sphi 0, %s44
      %s64 = sphi 0, %s64
      %s66 = sphi 0, %s64
      %s67 = sphi 0, %s66
      %s81 = sphi 0, %s67
      %s85 = sphi 0, %s85
      %s87 = sphi 0, %s85
      %s88 = sphi 0, %s87
      %s102 = sphi 0, %s88
      %s106 = sphi 0, %s106
      %s108 = sphi 0, %s106
      %s109 = sphi 0, %s108
      %s123 = sphi 0, %s109
      %s127 = sphi 0, %s127
      %s129 = sphi 0, %s127
      %s130 = sphi 0, %s129
      %s144 = sphi 0, %s130
      %s150 = sphi 0, %s152
      %s153 = sphi 0, %s150
      %s154 = sphi 0, %s153
      %s170 = sphi 0, %s154
      %s178 = sphi 0, %s180
      %s181 = sphi 0, %s178
      %s182 = sphi 0, %s181
      %s198 = sphi 0, %s182
    $region4: #{tpu_custom_call.1} parent=1 // loop_header_branch
      %21 = sbr.rel (%p19) target = $region8
    $region5: #{tpu_custom_call.1} parent=1 // loop_body
      %s23 = ssub.s32 %s18, 1
      %s24 = ssub.s32 %s18, 2
      %s31 = sadd.s32 1, %s26
      %p32 = scmp.ge.s32.totalorder %s31, 1
      %s33 = scalar_select %p32, 0, %s31
      %s34 = sadd.s32 1, %s25
      %s35 = scalar_select %p32, %s34, %s25
      %p36 = scmp.ge.s32.totalorder %s35, 2
      %s37 = scalar_select %p36, 0, %s35
      %s38 = ssub.s32 %s25, %s37
      %p39 = scmp.eq.s32.totalorder %s38, 0
      %s41 = sadd.s32 %s40, 1
      %s42 = scalar_select %p39, %s40, %s41
      %p45 = pneg %p39
      %p46 = scmp.eq.s32.totalorder %s18, 1
      %p47 = por %p45, %p46
      %p48 = scmp.ne.s32.totalorder %s40, %s43
      %p49 = scmp.eq.s32.totalorder %s18, 0
      %p50 = por %p48, %p49
      %p51 = scmp.ne.s32.totalorder %s40, %s43
      %p52 = scmp.eq.s32.totalorder %s23, 1
      %p53 = por %p51, %p52
      %p54 = scmp.ne.s32.totalorder %s43, %s44
      %p55 = scmp.eq.s32.totalorder %s23, 0
      %p56 = por %p54, %p55
      %p57 = scmp.ne.s32.totalorder %s43, %s44
      %p58 = scmp.eq.s32.totalorder %s24, 1
      %p59 = por %p57, %p58
      %p61 = scmp.ne.s32.totalorder %s44, %s60
      %p62 = scmp.eq.s32.totalorder %s24, 0
      %p63 = por %p61, %p62
      %s65 = sadd.s32 %s64, 1
      %p68 = scmp.eq.s32.totalorder %s18, 1
      %p69 = scmp.ne.s32.totalorder %s64, %s66
      %p70 = scmp.eq.s32.totalorder %s18, 0
      %p71 = por %p69, %p70
      %p72 = scmp.ne.s32.totalorder %s64, %s66
      %p73 = scmp.eq.s32.totalorder %s23, 1
      %p74 = por %p72, %p73
      %p75 = scmp.ne.s32.totalorder %s66, %s67
      %p76 = scmp.eq.s32.totalorder %s23, 0
      %p77 = por %p75, %p76
      %p78 = scmp.ne.s32.totalorder %s66, %s67
      %p79 = scmp.eq.s32.totalorder %s24, 1
      %p80 = por %p78, %p79
      %p82 = scmp.ne.s32.totalorder %s67, %s81
      %p83 = scmp.eq.s32.totalorder %s24, 0
      %p84 = por %p82, %p83
      %s86 = sadd.s32 %s85, 1
      %p89 = scmp.eq.s32.totalorder %s18, 1
      %p90 = scmp.ne.s32.totalorder %s85, %s87
      %p91 = scmp.eq.s32.totalorder %s18, 0
      %p92 = por %p90, %p91
      %p93 = scmp.ne.s32.totalorder %s85, %s87
      %p94 = scmp.eq.s32.totalorder %s23, 1
      %p95 = por %p93, %p94
      %p96 = scmp.ne.s32.totalorder %s87, %s88
      %p97 = scmp.eq.s32.totalorder %s23, 0
      %p98 = por %p96, %p97
      %p99 = scmp.ne.s32.totalorder %s87, %s88
      %p100 = scmp.eq.s32.totalorder %s24, 1
      %p101 = por %p99, %p100
      %p103 = scmp.ne.s32.totalorder %s88, %s102
      %p104 = scmp.eq.s32.totalorder %s24, 0
      %p105 = por %p103, %p104
      %s107 = sadd.s32 %s106, 1
      %p110 = scmp.eq.s32.totalorder %s18, 1
      %p111 = scmp.ne.s32.totalorder %s106, %s108
      %p112 = scmp.eq.s32.totalorder %s18, 0
      %p113 = por %p111, %p112
      %p114 = scmp.ne.s32.totalorder %s106, %s108
      %p115 = scmp.eq.s32.totalorder %s23, 1
      %p116 = por %p114, %p115
      %p117 = scmp.ne.s32.totalorder %s108, %s109
      %p118 = scmp.eq.s32.totalorder %s23, 0
      %p119 = por %p117, %p118
      %p120 = scmp.ne.s32.totalorder %s108, %s109
      %p121 = scmp.eq.s32.totalorder %s24, 1
      %p122 = por %p120, %p121
      %p124 = scmp.ne.s32.totalorder %s109, %s123
      %p125 = scmp.eq.s32.totalorder %s24, 0
      %p126 = por %p124, %p125
      %s128 = sadd.s32 %s127, 1
      %p131 = scmp.eq.s32.totalorder %s18, 1
      %p132 = scmp.ne.s32.totalorder %s127, %s129
      %p133 = scmp.eq.s32.totalorder %s18, 0
      %p134 = por %p132, %p133
      %p135 = scmp.ne.s32.totalorder %s127, %s129
      %p136 = scmp.eq.s32.totalorder %s23, 1
      %p137 = por %p135, %p136
      %p138 = scmp.ne.s32.totalorder %s129, %s130
      %p139 = scmp.eq.s32.totalorder %s23, 0
      %p140 = por %p138, %p139
      %p141 = scmp.ne.s32.totalorder %s129, %s130
      %p142 = scmp.eq.s32.totalorder %s24, 1
      %p143 = por %p141, %p142
      %p145 = scmp.ne.s32.totalorder %s130, %s144
      %p146 = scmp.eq.s32.totalorder %s24, 0
      %p147 = por %p145, %p146
      %s148 = ssub.s32 %s26, %s33
      %p149 = scmp.eq.s32.totalorder %s148, 0
      %s151 = sadd.s32 %s150, 1
      %s152 = scalar_select %p149, %s150, %s151
      %p155 = pneg %p149
      %p156 = scmp.eq.s32.totalorder %s18, 1
      %p157 = por %p155, %p156
      %p158 = scmp.ne.s32.totalorder %s150, %s153
      %p159 = scmp.eq.s32.totalorder %s18, 0
      %p160 = por %p158, %p159
      %p161 = scmp.ne.s32.totalorder %s150, %s153
      %p162 = scmp.eq.s32.totalorder %s23, 1
      %p163 = por %p161, %p162
      %p164 = scmp.ne.s32.totalorder %s153, %s154
      %p165 = scmp.eq.s32.totalorder %s23, 0
      %p166 = por %p164, %p165
      %p167 = scmp.ne.s32.totalorder %s153, %s154
      %p168 = scmp.eq.s32.totalorder %s24, 1
      %p169 = por %p167, %p168
      %p171 = scmp.ne.s32.totalorder %s154, %s170
      %p172 = scmp.eq.s32.totalorder %s24, 0
      %p173 = por %p171, %p172
      %s174 = ssub.s32 %s25, %s37
      %s175 = ssub.s32 %s26, %s33
      %s176 = sor.u32 %s174, %s175
      %p177 = scmp.eq.s32.totalorder %s176, 0
      %s179 = sadd.s32 %s178, 1
      %s180 = scalar_select %p177, %s178, %s179
      %p183 = pneg %p177
      %p184 = scmp.eq.s32.totalorder %s18, 1
      %p185 = por %p183, %p184
      %p186 = scmp.ne.s32.totalorder %s178, %s181
      %p187 = scmp.eq.s32.totalorder %s18, 0
      %p188 = por %p186, %p187
      %p189 = scmp.ne.s32.totalorder %s178, %s181
      %p190 = scmp.eq.s32.totalorder %s23, 1
      %p191 = por %p189, %p190
      %p192 = scmp.ne.s32.totalorder %s181, %s182
      %p193 = scmp.eq.s32.totalorder %s23, 0
      %p194 = por %p192, %p193
      %p195 = scmp.ne.s32.totalorder %s181, %s182
      %p196 = scmp.eq.s32.totalorder %s24, 1
      %p197 = por %p195, %p196
      %p199 = scmp.ne.s32.totalorder %s182, %s198
      %p200 = scmp.eq.s32.totalorder %s24, 0
      %p201 = por %p199, %p200
      %p202 = scmp.le.s32.totalorder 1, %s18
      %p203 = scmp.lt.s32.totalorder %s18, 3
      %p204 = pnand %p202, %p203
      %p205 = pneg %p204
      // Predicated region
      $region9: #{tpu_custom_call.1} parent=5 // pred_check
        _
      $region10: #{tpu_custom_call.1} parent=5 // pred_check_branch
        %207 = sbr.rel (%p204) target = $region12
      $region11: #{tpu_custom_call.1} parent=5 // pred_region
        %s208 = ssub.s32 %s18, 1
        // Predicated region
        $region13: #{tpu_custom_call.1} parent=11 // pred_check
          %p209 = pneg %p77
        $region14: #{tpu_custom_call.1} parent=11 // pred_check_branch
          %211 = sbr.rel (%p209) target = $region16
        $region15: #{tpu_custom_call.1} parent=11 // pred_region
          _
        $region16: #{tpu_custom_call.1} parent=11 // pred_fallthru
          _
        // Predicated region
        $region17: #{tpu_custom_call.1} parent=11 // pred_check
          %p212 = pneg %p98
        $region18: #{tpu_custom_call.1} parent=11 // pred_check_branch
          %214 = sbr.rel (%p212) target = $region20
        $region19: #{tpu_custom_call.1} parent=11 // pred_region
          _
        $region20: #{tpu_custom_call.1} parent=11 // pred_fallthru
          _
        // Predicated region
        $region21: #{tpu_custom_call.1} parent=11 // pred_check
          %p215 = pneg %p119
        $region22: #{tpu_custom_call.1} parent=11 // pred_check_branch
          %217 = sbr.rel (%p215) target = $region24
        $region23: #{tpu_custom_call.1} parent=11 // pred_region
          _
        $region24: #{tpu_custom_call.1} parent=11 // pred_fallthru
          _
        // Predicated region
        $region25: #{tpu_custom_call.1} parent=11 // pred_check
          %p218 = pneg %p140
        $region26: #{tpu_custom_call.1} parent=11 // pred_check_branch
          %220 = sbr.rel (%p218) target = $region28
        $region27: #{tpu_custom_call.1} parent=11 // pred_region
          _
        $region28: #{tpu_custom_call.1} parent=11 // pred_fallthru
          _
        // Predicated region
        $region29: #{tpu_custom_call.1} parent=11 // pred_check
          %p221 = pneg %p166
        $region30: #{tpu_custom_call.1} parent=11 // pred_check_branch
          %223 = sbr.rel (%p221) target = $region32
        $region31: #{tpu_custom_call.1} parent=11 // pred_region
          %p224 = scmp.lt.s32.totalorder %s28, 0
          %s225 = scalar_select %p224, %s28, 0
          %s226 = smul.addr %s225, 8
          %s227 = scalar_lea.vmem %s5, %s226
        $region32: #{tpu_custom_call.1} parent=11 // pred_fallthru
          _
      $region12: #{tpu_custom_call.1} parent=5 // pred_fallthru
        _
      %p228 = scmp.lt.s32.totalorder %s18, 2
      // Predicated region
      $region33: #{tpu_custom_call.1} parent=5 // pred_check
        %p229 = pneg %p228
      $region34: #{tpu_custom_call.1} parent=5 // pred_check_branch
        %231 = sbr.rel (%p229) target = $region36
      $region35: #{tpu_custom_call.1} parent=5 // pred_region
        // Predicated region
        $region37: #{tpu_custom_call.1} parent=35 // pred_check
          %p232 = pneg %p50
        $region38: #{tpu_custom_call.1} parent=35 // pred_check_branch
          %234 = sbr.rel (%p232) target = $region40
        $region39: #{tpu_custom_call.1} parent=35 // pred_region
          %s235 = sand.u32 %s40, 1
          %s236 = scalar_lea.sflag [#allocation4], %s235
          %s237 = sand.u32 %s40, 1
          %s238 = smul.addr %s237, 24
          %s239 = scalar_lea.vmem [#allocation3], %s238
          %s241 = ssub.s32 384, 384
          %242 = vsyncadd %s236, %s241
          %s243 = smul.addr %s25, 3
          %s244 = smul.addr %s243, 128
          %s245 = scalar_lea.hbm %s0, %s244
          %s247 = sshll.u32 %s239, 4
          %s248 = int_to_ptr.vmem [resolvable:$true] %s247
          %250 = dma.hbm_to_vmem [thread:$0]  %s245, 384, %s248, %s236
        $region40: #{tpu_custom_call.1} parent=35 // pred_fallthru
          _
      $region36: #{tpu_custom_call.1} parent=5 // pred_fallthru
        _
      %p251 = scmp.le.s32.totalorder 1, %s18
      %p252 = scmp.lt.s32.totalorder %s18, 3
      %p253 = pnand %p251, %p252
      %p254 = pneg %p253
      // Predicated region
      $region41: #{tpu_custom_call.1} parent=5 // pred_check
        _
      $region42: #{tpu_custom_call.1} parent=5 // pred_check_branch
        %256 = sbr.rel (%p253) target = $region44
      $region43: #{tpu_custom_call.1} parent=5 // pred_region
        %s257 = ssub.s32 %s18, 1
        %s258 = sand.u32 %s43, 1
        %s259 = scalar_lea.sflag [#allocation4], %s258
        %s260 = sand.u32 %s43, 1
        %s261 = smul.addr %s260, 24
        %s262 = scalar_lea.vmem [#allocation3], %s261
        // Predicated region
        $region45: #{tpu_custom_call.1} parent=43 // pred_check
          %p263 = pneg %p56
        $region46: #{tpu_custom_call.1} parent=43 // pred_check_branch
          %265 = sbr.rel (%p263) target = $region48
        $region47: #{tpu_custom_call.1} parent=43 // pred_region
          %266 = dma.done %s259, 384
        $region48: #{tpu_custom_call.1} parent=43 // pred_fallthru
          _
        %s267 = sand.u32 %s43, 1
        %s268 = scalar_lea.sflag [#allocation4], %s267
        %s269 = sand.u32 %s43, 1
        %s270 = smul.addr %s269, 24
        %s271 = scalar_lea.vmem [#allocation3], %s270
        %p272 = pneg %p56
        %p273 = pneg %p53
        %p274 = pneg %p77
        %p275 = pneg %p74
        %p276 = pneg %p98
        %p277 = pneg %p95
        %p278 = pneg %p119
        %p279 = pneg %p116
        %p280 = pneg %p140
        %p281 = pneg %p137
        %p282 = scmp.lt.s32.totalorder %s28, 0
        %s283 = scalar_select %p282, %s28, 0
        %s284 = smul.addr %s283, 8
        %s285 = scalar_lea.vmem %s5, %s284
        %p286 = pneg %p166
        %p287 = pneg %p163
        %p288 = pneg %p194
        %p289 = pneg %p191
        %s290 = sand.u32 %s181, 1
        %s291 = scalar_lea.sflag [#allocation5], %s290
        %s292 = sand.u32 %s181, 1
        %s293 = smul.addr %s292, 8
        %s294 = scalar_lea.vmem [#allocation6], %s293
        %p295 = scmp.lt.s32.totalorder %s28, 0
        %s296 = scalar_select %p295, %s28, 0
        %s297 = smul.addr %s296, 8
        %s298 = scalar_lea.vmem %s5, %s297
        %s299 = smul.u32 %s28, 128
        %s300 = sshra.s32 %s299, 7
        %s301 = sand.u32 %s299, 127
        %s302 = smul.addr %s300, 8
        %s303 = scalar_lea.vmem %s262, %s302 [#allocation3]
        %v304 = vld [vmem:[%s303] sm:$0xff]
        %v305 = vld [vmem:[%s303 + $0x8] sm:$0xff]
        %v306 = vld [vmem:[%s303 + $0x10] sm:$0xff]
        %307 = vst [vmem:[#allocation2] sm:$0xff] %v304
        %308 = vst [vmem:[#allocation2 + $0x8] sm:$0xff] %v305
        %312 = vrot.lane.b32.xlu0 %v304, 126
        %v313 = vpop.permute.xlu0 %312
        %314 = vrot.lane.b32.xlu0 %v305, 126
        %v315 = vpop.permute.xlu0 %314
        %316 = vrot.lane.b32.xlu0 %v306, 126
        %v317 = vpop.permute.xlu0 %316
        %vm318 = vcmask 1031168
        %v319 = vsel %vm318, %v313, %v315
        %v320 = vsel %vm318, %v315, %v317
        %323 = vst [vmem:[#allocation2 + $0x10] sm:$0xff] %v319
        %324 = vst [vmem:[#allocation2 + $0x18] sm:$0xff] %v320
        %325 = vrot.lane.b32.xlu0 %v304, 124
        %v326 = vpop.permute.xlu0 %325
        %327 = vrot.lane.b32.xlu0 %v305, 124
        %v328 = vpop.permute.xlu0 %327
        %329 = vrot.lane.b32.xlu0 %v306, 124
        %v330 = vpop.permute.xlu0 %329
        %vm331 = vcmask 1014784
        %v332 = vsel %vm331, %v326, %v328
        %v333 = vsel %vm331, %v328, %v330
        %336 = vst [vmem:[#allocation2 + $0x20] sm:$0xff] %v332
        %337 = vst [vmem:[#allocation2 + $0x28] sm:$0xff] %v333
        %v338 = vld [vmem:[%s1] sm:$0xff]
        %v339 = vld [vmem:[#allocation2] sm:$0xff]
        %v340 = vld [vmem:[#allocation2 + $0x8] sm:$0xff]
        %v341 = vld [vmem:[#allocation2 + $0x10] sm:$0xff]
        %v342 = vld [vmem:[#allocation2 + $0x18] sm:$0xff]
        %v343 = vld [vmem:[#allocation2 + $0x20] sm:$0xff]
        %v344 = vld [vmem:[#allocation2 + $0x28] sm:$0xff]
        %v345 = vld [vmem:[%s2] sm:$0xff]
        %347 = vset.pattern.permute.xlu0 0
        %348 = vperm.xlu0 %347, %v345
        %v349 = vpop.permute.xlu0 %348
        %vm351 = vcmask 195584
        %v353 = vsel %vm351, %v338, 0
        %355 = vmatprep.subr.mxu0 0.0
        %356 = vmatpush1.msra.mxu0 0.0
        %357 = vmatprep.subr.mxu0 0.0
        %358 = vmatpush1.msra.mxu0 0.0
        %359 = vmatprep.subr.mxu0 0.0
        %360 = vmatpush1.msra.mxu0 0.0
        %361 = vmatprep.subr.mxu0 0.0
        %362 = vmatpush1.msra.mxu0 0.0
        %363 = vmatprep.subr.mxu0 0.0
        %364 = vmatpush1.msra.mxu0 0.0
        %365 = vmatprep.subr.mxu0 0.0
        %366 = vmatpush1.msra.mxu0 0.0
        %367 = vmatprep.subr.mxu0 0.0
        %368 = vmatpush1.msra.mxu0 0.0
        %369 = vmatprep.subr.mxu0 0.0
        %370 = vmatpush1.msra.mxu0 0.0
        %371 = vmatprep.subr.mxu0 0.0
        %372 = vmatpush1.msra.mxu0 0.0
        %373 = vmatprep.subr.mxu0 0.0
        %374 = vmatpush1.msra.mxu0 0.0
        %375 = vmatprep.subr.mxu0 0.0
        %376 = vmatpush1.msra.mxu0 0.0
        %377 = vmatprep.subr.mxu0 0.0
        %378 = vmatpush1.msra.mxu0 0.0
        %379 = vmatprep.subr.mxu0 0.0
        %380 = vmatpush1.msra.mxu0 0.0
        %381 = vmatprep.subr.mxu0 %v344
        %382 = vmatpush1.msra.mxu0 %v343
        %383 = vmatprep.subr.mxu0 %v342
        %384 = vmatpush1.msra.mxu0 %v341
        %385 = vmatprep.subr.mxu0 %v340
        %386 = vmatpush1.msra.mxu0 %v339
        %387 = vmatprep.subr.mxu0 0.0
        %388 = vmatpush2.msra.mxu0 0.0
        %389 = vmatprep.subr.mxu0 0.0
        %390 = vmatpush2.msra.mxu0 0.0
        %391 = vmatprep.subr.mxu0 0.0
        %392 = vmatpush2.msra.mxu0 0.0
        %393 = vmatprep.subr.mxu0 0.0
        %394 = vmatpush2.msra.mxu0 0.0
        %395 = vmatprep.subr.mxu0 0.0
        %396 = vmatpush2.msra.mxu0 0.0
        %397 = vmatprep.subr.mxu0 0.0
        %398 = vmatpush2.msra.mxu0 0.0
        %399 = vmatprep.subr.mxu0 0.0
        %400 = vmatpush2.msra.mxu0 0.0
        %401 = vmatprep.subr.mxu0 0.0
        %402 = vmatpush2.msra.mxu0 0.0
        %403 = vmatprep.subr.mxu0 0.0
        %404 = vmatpush2.msra.mxu0 0.0
        %405 = vmatprep.subr.mxu0 0.0
        %406 = vmatpush2.msra.mxu0 0.0
        %407 = vmatprep.subr.mxu0 0.0
        %408 = vmatpush2.msra.mxu0 0.0
        %409 = vmatprep.subr.mxu0 0.0
        %410 = vmatpush2.msra.mxu0 0.0
        %411 = vmatprep.subr.mxu0 0.0
        %412 = vmatpush2.msra.mxu0 0.0
        %413 = vmatprep.subr.mxu0 0.0
        %414 = vmatpush2.msra.mxu0 0.0
        %415 = vmatprep.subr.mxu0 0.0
        %416 = vmatpush2.msra.mxu0 0.0
        %417 = vmatprep.subr.mxu0 0.0
        %418 = vmatpush2.msra.mxu0 0.0
        %419 = vmatprep.mubr.f32.mxu0 0.0
        %420 = vmatmul.mubr.f32.gmra.mxu0 %v353
        %v421 = vpop.f32.mrf.mxu0
        %v422 = vadd.f32 %v349, %v421
        %v423 = vpop.f32.mrf.mxu0
        %v424 = vadd.f32 %v349, %v423
        %425 = vdwg.mxu0
        %v426 = vmax.f32 %v422, 0.0
        %v427 = vmax.f32 %v424, 0.0
        %v428 = vld [vmem:[%s298] sm:$0x1]
        %v429 = vlaneseq
        %v430 = vshrl.u32 %v429, 7
        %v431 = vsub.s32 0, %v430
        %v432 = vrot.slane %v428, %v431
        %v433 = vmul.f32 %v426, %v432
        %434 = vst [vmem:[#allocation2] sm:$0xff] %v433
        %v435 = vld [vmem:[%s298 + $0x1] sm:$0x1]
        %v436 = vlaneseq
        %v437 = vshrl.u32 %v436, 7
        %v438 = vsub.s32 0, %v437
        %v439 = vrot.slane %v435, %v438
        %441 = vrot.lane.b32.xlu0 %v439, 2
        %v442 = vpop.permute.xlu0 %441
        %v444 = vmul.f32 %v426, %v442
        %v445 = vmul.f32 %v427, %v442
        %448 = vrot.lane.b32.xlu0 %v444, 126
        %v449 = vpop.permute.xlu0 %448
        %450 = vrot.lane.b32.xlu0 %v445, 126
        %v451 = vpop.permute.xlu0 %450
        %v452 = vsel %vm318, %v449, %v451
        %454 = vst [vmem:[#allocation2 + $0x10] sm:$0xff] %v452
        %v455 = vld [vmem:[%s298 + $0x2] sm:$0x1]
        %v456 = vlaneseq
        %v457 = vshrl.u32 %v456, 7
        %v458 = vsub.s32 0, %v457
        %v459 = vrot.slane %v455, %v458
        %461 = vrot.lane.b32.xlu0 %v459, 4
        %v462 = vpop.permute.xlu0 %461
        %v464 = vmul.f32 %v426, %v462
        %v465 = vmul.f32 %v427, %v462
        %468 = vrot.lane.b32.xlu0 %v464, 124
        %v469 = vpop.permute.xlu0 %468
        %470 = vrot.lane.b32.xlu0 %v465, 124
        %v471 = vpop.permute.xlu0 %470
        %v472 = vsel %vm331, %v469, %v471
        %474 = vst [vmem:[#allocation2 + $0x20] sm:$0xff] %v472
        %475 = vst [vmem:[#allocation2 + $0x30] sm:$0xff] %v332
        %v476 = vld [vmem:[%s298 + $0x3] sm:$0x1]
        %v477 = vlaneseq
        %v478 = vshrl.u32 %v477, 7
        %v479 = vsub.s32 0, %v478
        %v480 = vrot.slane %v476, %v479
        %481 = vst [vmem:[#allocation2 + $0x40] sm:$0xff] %v480
        %v482 = vld [vmem:[%s3] sm:$0xff]
        %v483 = vld [vmem:[#allocation2] sm:$0xff]
        %v484 = vld [vmem:[#allocation2 + $0x10] sm:$0xff]
        %v485 = vld [vmem:[#allocation2 + $0x20] sm:$0xff]
        %v486 = vld [vmem:[#allocation2 + $0x30] sm:$0xff]
        %v487 = vld [vmem:[#allocation2 + $0x40] sm:$0xff]
        %v488 = vld [vmem:[%s4] sm:$0xff]
        %490 = vset.pattern.permute.xlu0 0
        %491 = vperm.xlu0 %490, %v488
        %v492 = vpop.permute.xlu0 %491
        %vm494 = vcmask 326656
        %v496 = vsel %vm494, %v482, 0
        %498 = vmatprep.subr.mxu0 0.0
        %499 = vmatpush1.msra.mxu0 0.0
        %500 = vmatprep.subr.mxu0 0.0
        %501 = vmatpush1.msra.mxu0 0.0
        %502 = vmatprep.subr.mxu0 0.0
        %503 = vmatpush1.msra.mxu0 0.0
        %504 = vmatprep.subr.mxu0 0.0
        %505 = vmatpush1.msra.mxu0 0.0
        %506 = vmatprep.subr.mxu0 0.0
        %507 = vmatpush1.msra.mxu0 0.0
        %508 = vmatprep.subr.mxu0 0.0
        %509 = vmatpush1.msra.mxu0 0.0
        %510 = vmatprep.subr.mxu0 0.0
        %511 = vmatpush1.msra.mxu0 0.0
        %512 = vmatprep.subr.mxu0 0.0
        %513 = vmatpush1.msra.mxu0 0.0
        %514 = vmatprep.subr.mxu0 0.0
        %515 = vmatpush1.msra.mxu0 0.0
        %516 = vmatprep.subr.mxu0 0.0
        %517 = vmatpush1.msra.mxu0 0.0
        %518 = vmatprep.subr.mxu0 0.0
        %519 = vmatpush1.msra.mxu0 0.0
        %520 = vmatprep.subr.mxu0 0.0
        %521 = vmatpush1.msra.mxu0 %v487
        %522 = vmatprep.subr.mxu0 0.0
        %523 = vmatpush1.msra.mxu0 %v486
        %524 = vmatprep.subr.mxu0 0.0
        %525 = vmatpush1.msra.mxu0 %v485
        %526 = vmatprep.subr.mxu0 0.0
        %527 = vmatpush1.msra.mxu0 %v484
        %528 = vmatprep.subr.mxu0 0.0
        %529 = vmatpush1.msra.mxu0 %v483
        %530 = vmatprep.subr.mxu0 0.0
        %531 = vmatpush2.msra.mxu0 0.0
        %532 = vmatprep.subr.mxu0 0.0
        %533 = vmatpush2.msra.mxu0 0.0
        %534 = vmatprep.subr.mxu0 0.0
        %535 = vmatpush2.msra.mxu0 0.0
        %536 = vmatprep.subr.mxu0 0.0
        %537 = vmatpush2.msra.mxu0 0.0
        %538 = vmatprep.subr.mxu0 0.0
        %539 = vmatpush2.msra.mxu0 0.0
        %540 = vmatprep.subr.mxu0 0.0
        %541 = vmatpush2.msra.mxu0 0.0
        %542 = vmatprep.subr.mxu0 0.0
        %543 = vmatpush2.msra.mxu0 0.0
        %544 = vmatprep.subr.mxu0 0.0
        %545 = vmatpush2.msra.mxu0 0.0
        %546 = vmatprep.subr.mxu0 0.0
        %547 = vmatpush2.msra.mxu0 0.0
        %548 = vmatprep.subr.mxu0 0.0
        %549 = vmatpush2.msra.mxu0 0.0
        %550 = vmatprep.subr.mxu0 0.0
        %551 = vmatpush2.msra.mxu0 0.0
        %552 = vmatprep.subr.mxu0 0.0
        %553 = vmatpush2.msra.mxu0 0.0
        %554 = vmatprep.subr.mxu0 0.0
        %555 = vmatpush2.msra.mxu0 0.0
        %556 = vmatprep.subr.mxu0 0.0
        %557 = vmatpush2.msra.mxu0 0.0
        %558 = vmatprep.subr.mxu0 0.0
        %559 = vmatpush2.msra.mxu0 0.0
        %560 = vmatprep.subr.mxu0 0.0
        %561 = vmatpush2.msra.mxu0 0.0
        %562 = vmatprep.mubr.f32.mxu0 0.0
        %563 = vmatmul.mubr.f32.gmra.mxu0 %v496
        %v564 = vpop.f32.mrf.mxu0
        %v565 = vadd.f32 %v492, %v564
        %v566 = vpop.f32.mrf.mxu0
        %567 = vdwg.mxu0
        %v568 = vmax.f32 %v565, 0.0
        %569 = vst [vmem:[%s294] sm:$0xff] %v568
        %s570 = sand.u32 %s181, 1
        %s571 = scalar_lea.sflag [#allocation5], %s570
        %s572 = sand.u32 %s181, 1
        %s573 = smul.addr %s572, 8
        %s574 = scalar_lea.vmem [#allocation6], %s573
        // Predicated region
        $region49: #{tpu_custom_call.1} parent=43 // pred_check
          %p575 = pneg %p191
        $region50: #{tpu_custom_call.1} parent=43 // pred_check_branch
          %577 = sbr.rel (%p575) target = $region52
        $region51: #{tpu_custom_call.1} parent=43 // pred_region
          %s579 = ssub.s32 128, 128
          %580 = vsyncadd %s571, %s579
          %s581 = sadd.s32 %s28, %s27
          %s582 = smul.addr %s581, 128
          %s583 = scalar_lea.hbm %s6, %s582
          %s585 = sshll.u32 %s574, 4
          %s586 = int_to_ptr.vmem [resolvable:$true] %s585
          %588 = dma.vmem_to_hbm [thread:$0]  %s586, 128, %s583, %s571
        $region52: #{tpu_custom_call.1} parent=43 // pred_fallthru
          _
      $region44: #{tpu_custom_call.1} parent=5 // pred_fallthru
        _
      %p589 = scmp.le.s32.totalorder 2, %s18
      // Predicated region
      $region53: #{tpu_custom_call.1} parent=5 // pred_check
        %p590 = pneg %p589
      $region54: #{tpu_custom_call.1} parent=5 // pred_check_branch
        %592 = sbr.rel (%p590) target = $region56
      $region55: #{tpu_custom_call.1} parent=5 // pred_region
        %s593 = ssub.s32 %s18, 2
        // Predicated region
        $region57: #{tpu_custom_call.1} parent=55 // pred_check
          %p594 = pneg %p197
        $region58: #{tpu_custom_call.1} parent=55 // pred_check_branch
          %596 = sbr.rel (%p594) target = $region60
        $region59: #{tpu_custom_call.1} parent=55 // pred_region
          %s597 = sand.u32 %s182, 1
          %s598 = scalar_lea.sflag [#allocation5], %s597
          %s599 = sand.u32 %s182, 1
          %s600 = smul.addr %s599, 8
          %s601 = scalar_lea.vmem [#allocation6], %s600
          %602 = dma.done %s598, 128
        $region60: #{tpu_custom_call.1} parent=55 // pred_fallthru
          _
      $region56: #{tpu_custom_call.1} parent=5 // pred_fallthru
        _
    $region6: #{tpu_custom_call.1} parent=1 // loop_footer
      %s22 = sadd.s32 1, %s18
    $region7: #{tpu_custom_call.1} parent=1 // loop_footer_branch
      %17 = sbr.rel target = $region3
    $region8: #{tpu_custom_call.1} parent=1 // loop_exit
      _
    %603 = vsyncpa [#allocation4], 1
    %s604 = scalar_lea.sflag [#allocation4], 1
    %605 = vsyncpa %s604, 1
    %606 = vsyncpa [#allocation5], 1
    %s607 = scalar_lea.sflag [#allocation5], 1
    %608 = vsyncpa %s607, 1

</llo_original>
